<compile_context>
chip_gen: v5e
topology: v5e:2x2
jax: 0.10.0
libtpu: 0.0.40
codegen_flags: <defaults>
</compile_context>

<pallas_src>
import jax
import jax.numpy as jnp
from jax.experimental import pallas as pl
from jax.experimental.pallas import tpu as pltpu

_BN_EPS = 1e-5
_LANE = 128


def _round_up(x, m):
    return (x + m - 1) // m * m


# --------------------------------------------------------------------------
# Kernel
# --------------------------------------------------------------------------
def _bn_classifier_kernel(x_ref, gamma_ref, beta_ref, w_ref,
                          feat_ref, score_ref, featb_ref, acc_ref):
    ci = pl.program_id(0)          # classifier-column (C) tile -- outer axis
    di = pl.program_id(1)          # contraction (D) tile       -- inner axis
    td = w_ref.shape[0]            # D-tile size (static)

    # One-time BatchNorm over the whole resident (N, D_pad) batch: first grid
    # step only.  f32 feature goes into the resident output buffer (written to
    # HBM once, at grid end); a bf16 copy is cached in scratch for all matmuls.
    @pl.when((ci == 0) & (di == 0))
    def _():
        x = x_ref[...].astype(jnp.float32)
        gamma = gamma_ref[...].astype(jnp.float32)
        beta = beta_ref[...].astype(jnp.float32)
        mean = jnp.mean(x, axis=0, keepdims=True)
        centered = x - mean
        var = jnp.mean(centered * centered, axis=0, keepdims=True)  # biased var
        inv_std = jax.lax.rsqrt(var + _BN_EPS)
        scale = inv_std * gamma                 # fold affine: feature = x*s + t
        shift = beta - mean * scale
        feature = x * scale + shift
        feat_ref[...] = feature.astype(feat_ref.dtype)
        featb_ref[...] = feature.astype(jnp.bfloat16)

    # Score accumulation over the contraction (D) axis -- last grid axis.
    @pl.when(di == 0)
    def _():
        acc_ref[...] = jnp.zeros_like(acc_ref)

    d0 = pl.multiple_of(di * td, _LANE)
    lhs = featb_ref[:, pl.ds(d0, td)]           # (N, td) bf16, cached feature
    acc_ref[...] += jnp.dot(lhs, w_ref[...],    # W already bf16 in HBM
                            preferred_element_type=jnp.float32)

    @pl.when(di == pl.num_programs(1) - 1)
    def _():
        score_ref[...] = acc_ref[...].astype(score_ref.dtype)


# --------------------------------------------------------------------------
# VMEM budgeting / tile selection
# --------------------------------------------------------------------------
def _vmem_limit_bytes():
    capacity = 64 * 1024 * 1024          # conservative default (v7x physical)
    try:
        info = pltpu.get_tpu_info()
        capacity = int(getattr(info, "vmem_capacity_bytes", capacity))
    except Exception:
        pass
    capacity = max(capacity, 32 * 1024 * 1024)
    # ~75% of physical: ~96 MiB on v5e/v6e (128 MiB), ~48 MiB on v7x (64 MiB).
    return min((capacity * 3) // 4, 112 * 1024 * 1024)


def _vmem_bytes(n, d_pad, td, tc):
    f32, bf16 = 4, 2
    resident = (
        2 * f32 * n * d_pad      # x input (worst case: double-buffered)
        + 2 * f32 * n * d_pad    # feature output
        + bf16 * n * d_pad       # bf16 feature cache (scratch)
        + 2 * f32 * 2 * d_pad    # gamma + beta
    )
    streamed = (
        2 * bf16 * td * tc       # W^T tile, bf16, double-buffered
        + 2 * f32 * n * tc       # score output tile, double-buffered
        + f32 * n * tc           # f32 accumulator scratch
    )
    return resident + streamed


def _tile_candidates(dim_pad, cap):
    cap = max(_LANE, min(dim_pad, cap))
    return [t for t in range(cap, _LANE - 1, -_LANE) if dim_pad % t == 0]


def _choose_tiles(n, d_pad, c_pad, budget):
    # N (batch) is the MXU M dimension and is tiny here -> the kernel is
    # HBM-bound on W.  Bias toward large td (long W strips, fewer grid steps)
    # before growing tc.
    budget = max(budget, 8 * 1024 * 1024)
    tds = _tile_candidates(d_pad, 4096)
    tcs = _tile_candidates(c_pad, 512)
    for td in tds:                       # largest td first
        for tc in tcs:                   # then largest tc
            if _vmem_bytes(n, d_pad, td, tc) <= budget:
                return td, tc
    return tds[-1], tcs[-1]              # fall back to 128x128


# --------------------------------------------------------------------------
# Wrapper
# --------------------------------------------------------------------------
def bn_classifier(x, gamma, beta, weight, tiles=None):
    """Fused BatchNorm1d(batch stats) + Linear(bias=False).

    x:      (N, D) float32
    gamma:  (D,)   BN weight
    beta:   (D,)   BN bias
    weight: (C, D) classifier weight (PyTorch layout: out_features, in_features)

    Returns (feature (N, D), cls_score (N, C)).
    """
    n, d = x.shape
    c = weight.shape[0]

    d_pad = _round_up(d, _LANE)
    c_pad = _round_up(c, _LANE)

    x_p = jnp.pad(x, ((0, 0), (0, d_pad - d)))
    gamma_p = jnp.pad(gamma, (0, d_pad - d)).reshape(1, d_pad)
    beta_p = jnp.pad(beta, (0, d_pad - d)).reshape(1, d_pad)
    # W^T shipped as bf16: halves the dominant HBM read stream.  Zero padding
    # keeps padded feature/score columns exactly zero.
    w_t_p = jnp.pad(weight.T, ((0, d_pad - d), (0, c_pad - c))).astype(jnp.bfloat16)

    vmem_limit = _vmem_limit_bytes()
    if tiles is None:
        td, tc = _choose_tiles(n, d_pad, c_pad, budget=vmem_limit - 4 * 1024 * 1024)
    else:
        td, tc = tiles
    grid = (c_pad // tc, d_pad // td)    # contraction (D) axis last

    # TODO(synk): BN stats need the full batch, so N stays resident; for very
    # large N a separate stats pass + N tiling would be required.
    feat_p, score_p = pl.pallas_call(
        _bn_classifier_kernel,
        out_shape=(
            jax.ShapeDtypeStruct((n, d_pad), x.dtype),
            jax.ShapeDtypeStruct((n, c_pad), x.dtype),
        ),
        grid_spec=pltpu.PrefetchScalarGridSpec(
            num_scalar_prefetch=0,
            grid=grid,
            in_specs=[
                pl.BlockSpec((n, d_pad), lambda ci, di: (0, 0)),   # x (resident)
                pl.BlockSpec((1, d_pad), lambda ci, di: (0, 0)),   # gamma (resident)
                pl.BlockSpec((1, d_pad), lambda ci, di: (0, 0)),   # beta (resident)
                pl.BlockSpec((td, tc), lambda ci, di: (di, ci)),   # W^T streamed once
            ],
            out_specs=[
                pl.BlockSpec((n, d_pad), lambda ci, di: (0, 0)),   # feature: 1 writeback
                pl.BlockSpec((n, tc), lambda ci, di: (0, ci)),     # score per C tile
            ],
            scratch_shapes=[
                pltpu.VMEM((n, d_pad), jnp.bfloat16),   # cached bf16 feature
                pltpu.VMEM((n, tc), jnp.float32),       # score accumulator
            ],
        ),
        compiler_params=pltpu.CompilerParams(
            dimension_semantics=("arbitrary", "arbitrary"),
            vmem_limit_bytes=int(vmem_limit),
        ),
    )(x_p, gamma_p, beta_p, w_t_p)

    return feat_p[:, :d], score_p[:, :c]


# --------------------------------------------------------------------------
# Reference / test
# --------------------------------------------------------------------------
def make_params(in_dim, class_num, key):
    # weights_init_kaiming on BatchNorm1d: weight=1, bias=0.
    gamma = jnp.ones((in_dim,), jnp.float32)
    beta = jnp.zeros((in_dim,), jnp.float32)
    # weights_init_classifier on Linear: normal(std=0.001), bias=False.
    w = jax.random.normal(key, (class_num, in_dim), jnp.float32) * 0.001
    return gamma, beta, w


def _reference(x, gamma, beta, w):
    mean = jnp.mean(x, axis=0, keepdims=True)
    var = jnp.mean((x - mean) ** 2, axis=0, keepdims=True)
    feat = (x - mean) / jnp.sqrt(var + _BN_EPS) * gamma + beta
    score = jnp.dot(feat, w.T, precision=jax.lax.Precision.HIGHEST)
    return feat, score


def _check(x, gamma, beta, w, tiles=None):
    feature, cls_score = bn_classifier(x, gamma, beta, w, tiles=tiles)
    feature = jax.block_until_ready(feature)
    cls_score = jax.block_until_ready(cls_score)

    feat_ref, score_ref = _reference(x, gamma, beta, w)
    assert feature.shape == feat_ref.shape
    assert cls_score.shape == score_ref.shape
    assert jnp.allclose(feature, feat_ref, atol=1e-4, rtol=1e-4)
    # cls_score uses bf16 MXU operands with f32 accumulation -> looser tol.
    assert jnp.allclose(cls_score, score_ref, atol=2e-3, rtol=2e-2)


if __name__ == "__main__":
    key = jax.random.PRNGKey(0)

    # Case 1: toy size (single-tile grid after 128-padding).
    # Case 2: non-multiple-of-128 dims -> padded to 384x384.
    for (batch, in_dim, class_num) in ((8, 32, 16), (8, 300, 260)):
        k_x, k_w, key = jax.random.split(key, 3)
        x = jax.random.normal(k_x, (batch, in_dim), jnp.float32)
        gamma, beta, w = make_params(in_dim, class_num, k_w)
        _check(x, gamma, beta, w)

    # Case 3: force 128x128 tiles on the 384x384-padded problem -> grid (3, 3),
    # exercising the D-axis accumulator, the C-tile loop, and the resident
    # x/feature + cached bf16-feature path across many grid steps.
    k_x, k_w, key = jax.random.split(key, 3)
    x = jax.random.normal(k_x, (8, 300), jnp.float32)
    gamma, beta, w = make_params(300, 260, k_w)
    _check(x, gamma, beta, w, tiles=(128, 128))

    print("KERNEL_OK")
</pallas_src>

<mosaic_0001>
module attributes {stable_mosaic.version = 11 : i64} {
  func.func @_bn_classifier_kernel(%arg0: i32, %arg1: i32, %arg2: memref<8x128xf32, #tpu.memory_space<vmem>>, %arg3: memref<1x128xf32, #tpu.memory_space<vmem>>, %arg4: memref<1x128xf32, #tpu.memory_space<vmem>>, %arg5: memref<128x128xbf16, #tpu.memory_space<vmem>>, %arg6: memref<8x128xf32, #tpu.memory_space<vmem>>, %arg7: memref<8x128xf32, #tpu.memory_space<vmem>>, %arg8: memref<8x128xbf16, #tpu.memory_space<vmem>>, %arg9: memref<8x128xf32, #tpu.memory_space<vmem>>) attributes {dimension_semantics = [#tpu.dimension_semantics<arbitrary>, #tpu.dimension_semantics<arbitrary>], iteration_bounds = array<i64: 1, 1>, scalar_prefetch = 0 : i64, scratch_operands = 2 : i64, tpu.core_type = #tpu.core_type<tc>, window_params = [{pipeline_mode = #tpu.pipeline_mode<synchronous>, transform_indices = @transform_0, window_bounds = array<i64: 8, 128>}, {pipeline_mode = #tpu.pipeline_mode<synchronous>, transform_indices = @transform_1, window_bounds = array<i64: 1, 128>}, {pipeline_mode = #tpu.pipeline_mode<synchronous>, transform_indices = @transform_2, window_bounds = array<i64: 1, 128>}, {transform_indices = @transform_3, window_bounds = array<i64: 128, 128>}, {pipeline_mode = #tpu.pipeline_mode<synchronous>, transform_indices = @transform_4, window_bounds = array<i64: 8, 128>}, {transform_indices = @transform_5, window_bounds = array<i64: 8, 128>}]} {
    %c0_i32 = arith.constant 0 : i32
    %0 = arith.cmpi eq, %arg0, %c0_i32 : i32
    %c0_i32_0 = arith.constant 0 : i32
    %1 = arith.cmpi eq, %arg1, %c0_i32_0 : i32
    %2 = arith.andi %0, %1 : i1
    %3 = arith.extui %2 : i1 to i32
    %c0_i32_1 = arith.constant 0 : i32
    %4 = arith.cmpi ne, %3, %c0_i32_1 : i32
    scf.if %4 {
      %c0_12 = arith.constant 0 : index
      %c0_13 = arith.constant 0 : index
      %20 = vector.load %arg2[%c0_12, %c0_13] : memref<8x128xf32, #tpu.memory_space<vmem>>, vector<8x128xf32>
      %c0_14 = arith.constant 0 : index
      %c0_15 = arith.constant 0 : index
      %21 = vector.load %arg3[%c0_14, %c0_15] : memref<1x128xf32, #tpu.memory_space<vmem>>, vector<1x128xf32>
      %c0_16 = arith.constant 0 : index
      %c0_17 = arith.constant 0 : index
      %22 = vector.load %arg4[%c0_16, %c0_17] : memref<1x128xf32, #tpu.memory_space<vmem>>, vector<1x128xf32>
      %cst_18 = arith.constant dense<0.000000e+00> : vector<128xf32>
      %23 = vector.multi_reduction <add>, %20, %cst_18 [0] : vector<8x128xf32> to vector<128xf32>
      %24 = vector.shape_cast %23 : vector<128xf32> to vector<1x128xf32>
      %cst_19 = arith.constant 8.000000e+00 : f32
      %25 = vector.broadcast %cst_19 : f32 to vector<1x128xf32>
      %26 = arith.divf %24, %25 : vector<1x128xf32>
      %27 = vector.broadcast %26 : vector<1x128xf32> to vector<8x128xf32>
      %28 = arith.subf %20, %27 : vector<8x128xf32>
      %29 = arith.mulf %28, %28 : vector<8x128xf32>
      %cst_20 = arith.constant dense<0.000000e+00> : vector<128xf32>
      %30 = vector.multi_reduction <add>, %29, %cst_20 [0] : vector<8x128xf32> to vector<128xf32>
      %31 = vector.shape_cast %30 : vector<128xf32> to vector<1x128xf32>
      %cst_21 = arith.constant 8.000000e+00 : f32
      %32 = vector.broadcast %cst_21 : f32 to vector<1x128xf32>
      %33 = arith.divf %31, %32 : vector<1x128xf32>
      %cst_22 = arith.constant 9.99999974E-6 : f32
      %34 = vector.broadcast %cst_22 : f32 to vector<1x128xf32>
      %35 = arith.addf %33, %34 : vector<1x128xf32>
      %36 = math.rsqrt %35 : vector<1x128xf32>
      %37 = arith.mulf %36, %21 : vector<1x128xf32>
      %38 = arith.mulf %26, %37 : vector<1x128xf32>
      %39 = arith.subf %22, %38 : vector<1x128xf32>
      %40 = vector.broadcast %37 : vector<1x128xf32> to vector<8x128xf32>
      %41 = arith.mulf %20, %40 : vector<8x128xf32>
      %42 = vector.broadcast %39 : vector<1x128xf32> to vector<8x128xf32>
      %43 = arith.addf %41, %42 : vector<8x128xf32>
      %c0_23 = arith.constant 0 : index
      %c0_24 = arith.constant 0 : index
      %44 = vector.load %arg6[%c0_23, %c0_24] : memref<8x128xf32, #tpu.memory_space<vmem>>, vector<8x128xf32>
      tpu.vector_store %arg6[%c0_23, %c0_24], %43 {strides = array<i32>} : memref<8x128xf32, #tpu.memory_space<vmem>>, vector<8x128xf32>,
      %45 = arith.truncf %43 : vector<8x128xf32> to vector<8x128xbf16>
      %c0_25 = arith.constant 0 : index
      %c0_26 = arith.constant 0 : index
      %46 = vector.load %arg8[%c0_25, %c0_26] : memref<8x128xbf16, #tpu.memory_space<vmem>>, vector<8x128xbf16>
      tpu.vector_store %arg8[%c0_25, %c0_26], %45 {strides = array<i32>} : memref<8x128xbf16, #tpu.memory_space<vmem>>, vector<8x128xbf16>,
    } else {
    }
    %c0_i32_2 = arith.constant 0 : i32
    %5 = arith.cmpi eq, %arg1, %c0_i32_2 : i32
    %6 = arith.extui %5 : i1 to i32
    %c0_i32_3 = arith.constant 0 : i32
    %7 = arith.cmpi ne, %6, %c0_i32_3 : i32
    scf.if %7 {
      %cst_12 = arith.constant 0.000000e+00 : f32
      %20 = vector.broadcast %cst_12 : f32 to vector<8x128xf32>
      %c0_13 = arith.constant 0 : index
      %c0_14 = arith.constant 0 : index
      %21 = vector.load %arg9[%c0_13, %c0_14] : memref<8x128xf32, #tpu.memory_space<vmem>>, vector<8x128xf32>
      tpu.vector_store %arg9[%c0_13, %c0_14], %20 {strides = array<i32>} : memref<8x128xf32, #tpu.memory_space<vmem>>, vector<8x128xf32>,
    } else {
    }
    %c128_i32 = arith.constant 128 : i32
    %8 = arith.muli %arg1, %c128_i32 : i32
    %9 = tpu.assume_multiple %8, 128 : i32
    %c0 = arith.constant 0 : index
    %10 = arith.index_cast %9 : i32 to index
    %11 = vector.load %arg8[%c0, %10] : memref<8x128xbf16, #tpu.memory_space<vmem>>, vector<8x128xbf16>
    %c0_4 = arith.constant 0 : index
    %c0_5 = arith.constant 0 : index
    %12 = vector.load %arg9[%c0_4, %c0_5] : memref<8x128xf32, #tpu.memory_space<vmem>>, vector<8x128xf32>
    %c0_6 = arith.constant 0 : index
    %c0_7 = arith.constant 0 : index
    %13 = vector.load %arg5[%c0_6, %c0_7] : memref<128x128xbf16, #tpu.memory_space<vmem>>, vector<128x128xbf16>
    %cst = arith.constant dense<0.000000e+00> : vector<8x128xf32>
    %14 = tpu.matmul %11, %13, %cst {dimension_numbers = #tpu.dot_dimension_numbers<[1], [0], [0], [1], [0, 0, 1, 1], [], []>} : vector<8x128xbf16>, vector<128x128xbf16>, vector<8x128xf32> -> vector<8x128xf32>
    %15 = arith.addf %12, %14 : vector<8x128xf32>
    %c0_8 = arith.constant 0 : index
    %c0_9 = arith.constant 0 : index
    %16 = vector.load %arg9[%c0_8, %c0_9] : memref<8x128xf32, #tpu.memory_space<vmem>>, vector<8x128xf32>
    tpu.vector_store %arg9[%c0_8, %c0_9], %15 {strides = array<i32>} : memref<8x128xf32, #tpu.memory_space<vmem>>, vector<8x128xf32>,
    %c0_i32_10 = arith.constant 0 : i32
    %17 = arith.cmpi eq, %arg1, %c0_i32_10 : i32
    %18 = arith.extui %17 : i1 to i32
    %c0_i32_11 = arith.constant 0 : i32
    %19 = arith.cmpi ne, %18, %c0_i32_11 : i32
    scf.if %19 {
      %c0_12 = arith.constant 0 : index
      %c0_13 = arith.constant 0 : index
      %20 = vector.load %arg9[%c0_12, %c0_13] : memref<8x128xf32, #tpu.memory_space<vmem>>, vector<8x128xf32>
      %c0_14 = arith.constant 0 : index
      %c0_15 = arith.constant 0 : index
      %21 = vector.load %arg7[%c0_14, %c0_15] : memref<8x128xf32, #tpu.memory_space<vmem>>, vector<8x128xf32>
      tpu.vector_store %arg7[%c0_14, %c0_15], %20 {strides = array<i32>} : memref<8x128xf32, #tpu.memory_space<vmem>>, vector<8x128xf32>,
    } else {
    }
    return
  }
  func.func @transform_0(%arg0: i32, %arg1: i32) -> (i32, i32) {
    %c0_i32 = arith.constant 0 : i32
    %c0_i32_0 = arith.constant 0 : i32
    %c0_i32_1 = arith.constant 0 : i32
    return %c0_i32, %c0_i32_0 : i32, i32
  }
  func.func @transform_1(%arg0: i32, %arg1: i32) -> (i32, i32) {
    %c0_i32 = arith.constant 0 : i32
    %c0_i32_0 = arith.constant 0 : i32
    %c0_i32_1 = arith.constant 0 : i32
    return %c0_i32, %c0_i32_0 : i32, i32
  }
  func.func @transform_2(%arg0: i32, %arg1: i32) -> (i32, i32) {
    %c0_i32 = arith.constant 0 : i32
    %c0_i32_0 = arith.constant 0 : i32
    %c0_i32_1 = arith.constant 0 : i32
    return %c0_i32, %c0_i32_0 : i32, i32
  }
  func.func @transform_3(%arg0: i32, %arg1: i32) -> (i32, i32) {
    %c0_i32 = arith.constant 0 : i32
    return %arg1, %arg0 : i32, i32
  }
  func.func @transform_4(%arg0: i32, %arg1: i32) -> (i32, i32) {
    %c0_i32 = arith.constant 0 : i32
    %c0_i32_0 = arith.constant 0 : i32
    %c0_i32_1 = arith.constant 0 : i32
    return %c0_i32, %c0_i32_0 : i32, i32
  }
  func.func @transform_5(%arg0: i32, %arg1: i32) -> (i32, i32) {
    %c0_i32 = arith.constant 0 : i32
    %c0_i32_0 = arith.constant 0 : i32
    return %c0_i32, %arg0 : i32, i32
  }
}

</mosaic_0001>

<llo_original>
// kernel: tpu_custom_call.1
$region0: #{tpu_custom_call.1}
  #allocation0 [shape = 'u32[]', space=smem, size = 0x4, offset = 0x4, fixed_abs, tag = 'smem constant byte address 0x4 - core index']
  #allocation1 [shape = 'u32[72,128]{1,0:T(1,128)}', space=vmem, size = 0x9000, scoped, tag = 'internal scratch']
  #allocation2 [shape = 'bf16[8,128]{1,0:T(8,128)(2,1)}', space=vmem, size = 0x800, scoped, tag = 'scratch operand']
  #allocation3 [shape = 'f32[8,128]{1,0:T(8,128)}', space=vmem, size = 0x1000, scoped, tag = 'scratch operand']
  %s0 = inlined_call_operand.hbm [shape: f32[8,128], index: 0, kind: input, shape index: {}]
  %s1 = inlined_call_operand.hbm [shape: f32[1,128], index: 1, kind: input, shape index: {}]
  %s2 = inlined_call_operand.vmem [shape: f32[1,128], index: 2, kind: input, shape index: {}]
  %s3 = inlined_call_operand.hbm [shape: bf16[128,128], index: 3, kind: input, shape index: {}]
  %s4 = inlined_call_operand.hbm [shape: f32[8,128], index: 4, kind: output, shape index: {0}]
  %s5 = inlined_call_operand.hbm [shape: f32[8,128], index: 5, kind: output, shape index: {1}]
  %6 = xla_tuple %s4, %s5
  %s7 = sld [smem:[#allocation0]]
  $region58: #{tpu_custom_call.1} parent=0
    _
  %s9 = ssub.s32 1, %s7
  %s10 = scalar_select 0, %s9, %s7
  $region1: #{tpu_custom_call.1} parent=0
    #allocation4 [shape = 'u8[4096]{0}', space=vmem, size = 0x1000, scoped, tag = 'input window, operand 0, single buffered']
    #allocation5 [shape = 's32[1]{0}', space=sflag, size = 0x4, scoped, tag = 'scoped memory for tpu_custom_call.1']
    #allocation6 [shape = 's32[1]{0}', space=sflag, size = 0x4, scoped, tag = 'scoped memory for tpu_custom_call.1']
    #allocation7 [shape = 'u8[512]{0}', space=vmem, size = 0x400, scoped, tag = 'input window, operand 1, single buffered']
    #allocation8 [shape = 's32[1]{0}', space=sflag, size = 0x4, scoped, tag = 'scoped memory for tpu_custom_call.1']
    #allocation9 [shape = 'u8[32768]{0}', space=vmem, size = 0x8000, scoped, tag = 'input window, operand 3, single buffered']
    #allocation10 [shape = 'u8[4096]{0}', space=vmem, size = 0x1000, scoped, tag = 'output window, operand 0, single buffered']
    #allocation11 [shape = 'u8[4096]{0}', space=vmem, size = 0x1000, scoped, tag = 'output window, operand 1, single buffered']
    #allocation12 [shape = 's32[1]{0}', space=sflag, size = 0x4, scoped, tag = 'scoped memory for tpu_custom_call.1']
    %11 = vsyncpa [#allocation5], 0
    %12 = vsyncpa [#allocation8], 0
    %13 = vsyncpa [#allocation6], 0
    %14 = vsyncpa [#allocation12], 0
    // Predicated region
    $region2: #{tpu_custom_call.1} parent=1 // pred_check
      _
    $region3: #{tpu_custom_call.1} parent=1 // pred_check_branch
      %16 = sbr.rel (0) target = $region5
    $region4: #{tpu_custom_call.1} parent=1 // pred_region
      %18 = vsyncadd [#allocation5], 0
      %s20 = sshll.u32 %s0, 4
      %s21 = int_to_ptr.hbm [resolvable:$true] %s20
      %s22 = sshll.u32 [#allocation4], 4
      %s23 = int_to_ptr.vmem [resolvable:$true] %s22
      %25 = dma.hbm_to_vmem [thread:$0]  %s21, 128, %s23, [#allocation5]
    $region5: #{tpu_custom_call.1} parent=1 // pred_fallthru
      _
    // Predicated region
    $region6: #{tpu_custom_call.1} parent=1 // pred_check
      _
    $region7: #{tpu_custom_call.1} parent=1 // pred_check_branch
      %27 = sbr.rel (0) target = $region9
    $region8: #{tpu_custom_call.1} parent=1 // pred_region
      %29 = vsyncadd [#allocation8], 0
      %s31 = sshll.u32 %s1, 4
      %s32 = int_to_ptr.hbm [resolvable:$true] %s31
      %s33 = sshll.u32 [#allocation7], 4
      %s34 = int_to_ptr.vmem [resolvable:$true] %s33
      %36 = dma.hbm_to_vmem [thread:$0]  %s32, 16, %s34, [#allocation8]
    $region9: #{tpu_custom_call.1} parent=1 // pred_fallthru
      _
    // Predicated region
    $region10: #{tpu_custom_call.1} parent=1 // pred_check
      _
    $region11: #{tpu_custom_call.1} parent=1 // pred_check_branch
      %38 = sbr.rel (0) target = $region13
    $region12: #{tpu_custom_call.1} parent=1 // pred_region
      _
    $region13: #{tpu_custom_call.1} parent=1 // pred_fallthru
      _
    // Predicated region
    $region14: #{tpu_custom_call.1} parent=1 // pred_check
      _
    $region15: #{tpu_custom_call.1} parent=1 // pred_check_branch
      %40 = sbr.rel (0) target = $region17
    $region16: #{tpu_custom_call.1} parent=1 // pred_region
      %42 = vsyncadd [#allocation8], 0
      %s43 = sshll.u32 %s3, 4
      %s44 = int_to_ptr.hbm [resolvable:$true] %s43
      %s45 = sshll.u32 [#allocation9], 4
      %s46 = int_to_ptr.vmem [resolvable:$true] %s45
      %51 = dma.hbm_to_vmem [thread:$0]  %s44, 1024, %s46, [#allocation8], 64, 64, 4
    $region17: #{tpu_custom_call.1} parent=1 // pred_fallthru
      _
    // Predicated region
    $region18: #{tpu_custom_call.1} parent=1 // pred_check
      _
    $region19: #{tpu_custom_call.1} parent=1 // pred_check_branch
      %53 = sbr.rel (0) target = $region21
    $region20: #{tpu_custom_call.1} parent=1 // pred_region
      %55 = dma.done [#allocation5], 128
    $region21: #{tpu_custom_call.1} parent=1 // pred_fallthru
      _
    // Predicated region
    $region22: #{tpu_custom_call.1} parent=1 // pred_check
      _
    $region23: #{tpu_custom_call.1} parent=1 // pred_check_branch
      %57 = sbr.rel (0) target = $region25
    $region24: #{tpu_custom_call.1} parent=1 // pred_region
      %59 = dma.done [#allocation8], 16
    $region25: #{tpu_custom_call.1} parent=1 // pred_fallthru
      _
    // Predicated region
    $region26: #{tpu_custom_call.1} parent=1 // pred_check
      _
    $region27: #{tpu_custom_call.1} parent=1 // pred_check_branch
      %61 = sbr.rel (0) target = $region29
    $region28: #{tpu_custom_call.1} parent=1 // pred_region
      %63 = dma.done [#allocation8], 1024
    $region29: #{tpu_custom_call.1} parent=1 // pred_fallthru
      _
    %p64 = scmp.eq.s32.totalorder 0, 0
    %p65 = scmp.eq.s32.totalorder 0, 0
    %p66 = pnand %p64, %p65
    %p67 = pneg %p66
    // Predicated region
    $region30: #{tpu_custom_call.1} parent=1 // pred_check
      _
    $region31: #{tpu_custom_call.1} parent=1 // pred_check_branch
      %69 = sbr.rel (%p66) target = $region33
    $region32: #{tpu_custom_call.1} parent=1 // pred_region
      %v70 = vld [vmem:[#allocation4] sm:$0xff]
      %v71 = vld [vmem:[#allocation7] sm:$0x1]
      %v72 = vld [vmem:[%s2] sm:$0x1]
      %v73 = vrot.slane %v70, 4
      %v74 = vadd.f32 %v70, %v73
      %v75 = vrot.slane %v74, 2
      %v76 = vadd.f32 %v74, %v75
      %v77 = vrot.slane %v76, 1
      %v78 = vadd.f32 %v76, %v77
      %v79 = vrcp.pop 8.0
      %v80 = vmul.f32 8.0, %v79
      %v81 = vsub.f32 1.0, %v80
      %v82 = vmul.f32 %v79, %v81
      %v83 = vadd.f32 %v79, %v82
      %vm84 = vweird.f32 %v79
      %v85 = vsel %vm84, %v79, %v83
      %v86 = vmul.f32 %v78, %v85
      %v87 = vsub.f32 %v70, %v86
      %v88 = vmul.f32 %v87, %v87
      %v89 = vrot.slane %v88, 4
      %v90 = vadd.f32 %v88, %v89
      %v91 = vrot.slane %v90, 2
      %v92 = vadd.f32 %v90, %v91
      %v93 = vrot.slane %v92, 1
      %v94 = vadd.f32 %v92, %v93
      %v95 = vmul.f32 %v94, %v85
      %v96 = vadd.f32 %v95, 1e-05
      %v97 = vrsqrt.pop %v96
      %v98 = vmul.f32 %v97, %v96
      %v99 = vmul.f32 %v98, %v97
      %v100 = vmul.f32 0.5, %v99
      %v101 = vsub.f32 1.5, %v100
      %v102 = vmul.f32 %v97, %v101
      %vm103 = vweird.f32 %v96
      %vm104 = vweird.f32 %v97
      %vm105 = vmor %vm103, %vm104
      %v106 = vsel %vm105, %v97, %v102
      %v107 = vmul.f32 %v106, %v71
      %v108 = vmul.f32 %v86, %v107
      %v109 = vsub.f32 %v72, %v108
      %v110 = vperm.slane %v107, 0
      %v111 = vmul.f32 %v70, %v110
      %v113 = vperm.slane %v109, 0
      %v115 = vadd.f32 %v111, %v113
      %116 = vst [vmem:[#allocation10] sm:$0xff] %v115
      %v117 = vpack.c.bf16 %v115, %v115
      %118 = vst [vmem:[#allocation2] sm:$0xf] %v117
    $region33: #{tpu_custom_call.1} parent=1 // pred_fallthru
      _
    // Predicated region
    $region34: #{tpu_custom_call.1} parent=1 // pred_check
      %p119 = pneg %p65
    $region35: #{tpu_custom_call.1} parent=1 // pred_check_branch
      %121 = sbr.rel (%p119) target = $region37
    $region36: #{tpu_custom_call.1} parent=1 // pred_region
      %122 = vst [vmem:[#allocation3] sm:$0xff] 0.0
    $region37: #{tpu_custom_call.1} parent=1 // pred_fallthru
      _
    %s123 = smul.u32 0, 128
    %s124 = sshra.s32 %s123, 7
    %s125 = sand.u32 %s123, 127
    %s126 = smul.addr %s124, 4
    %s127 = scalar_lea.vmem [#allocation2], %s126
    %v128 = vld [vmem:[%s127] sm:$0xf]
    %v129 = vld [vmem:[#allocation3] sm:$0xff]
    %v130 = vld [vmem:[#allocation9] sm:$0xf]
    %v131 = vld [vmem:[#allocation9 + $0x4] sm:$0xf]
    %v132 = vld [vmem:[#allocation9 + $0x8] sm:$0xf]
    %v133 = vld [vmem:[#allocation9 + $0xc] sm:$0xf]
    %v134 = vld [vmem:[#allocation9 + $0x10] sm:$0xf]
    %v135 = vld [vmem:[#allocation9 + $0x14] sm:$0xf]
    %v136 = vld [vmem:[#allocation9 + $0x18] sm:$0xf]
    %v137 = vld [vmem:[#allocation9 + $0x1c] sm:$0xf]
    %v138 = vld [vmem:[#allocation9 + $0x20] sm:$0xf]
    %v139 = vld [vmem:[#allocation9 + $0x24] sm:$0xf]
    %v140 = vld [vmem:[#allocation9 + $0x28] sm:$0xf]
    %v141 = vld [vmem:[#allocation9 + $0x2c] sm:$0xf]
    %v142 = vld [vmem:[#allocation9 + $0x30] sm:$0xf]
    %v143 = vld [vmem:[#allocation9 + $0x34] sm:$0xf]
    %v144 = vld [vmem:[#allocation9 + $0x38] sm:$0xf]
    %v145 = vld [vmem:[#allocation9 + $0x3c] sm:$0xf]
    %v162 = vunpack.c.l.b16 %v130
    %v163 = vunpack.c.l.b16 %v131
    %v164 = vunpack.c.l.b16 %v132
    %v165 = vunpack.c.l.b16 %v133
    %v166 = vunpack.c.l.b16 %v134
    %v167 = vunpack.c.l.b16 %v135
    %v168 = vunpack.c.l.b16 %v136
    %v169 = vunpack.c.l.b16 %v137
    %v170 = vunpack.c.l.b16 %v138
    %v171 = vunpack.c.l.b16 %v139
    %v172 = vunpack.c.l.b16 %v140
    %v173 = vunpack.c.l.b16 %v141
    %v174 = vunpack.c.l.b16 %v142
    %v175 = vunpack.c.l.b16 %v143
    %v176 = vunpack.c.l.b16 %v144
    %v177 = vunpack.c.l.b16 %v145
    %v178 = vpack.c.b16 %v163, %v162
    %v179 = vpack.c.b16 %v165, %v164
    %v180 = vpack.c.b16 %v167, %v166
    %v181 = vpack.c.b16 %v169, %v168
    %v182 = vpack.c.b16 %v171, %v170
    %v183 = vpack.c.b16 %v173, %v172
    %v184 = vpack.c.b16 %v175, %v174
    %v185 = vpack.c.b16 %v177, %v176
    %194 = vmatpush.bf16.msra.mxu0 %v185
    %195 = vmatpush.bf16.msra.mxu0 %v184
    %196 = vmatpush.bf16.msra.mxu0 %v183
    %197 = vmatpush.bf16.msra.mxu0 %v182
    %198 = vmatpush.bf16.msra.mxu0 %v181
    %199 = vmatpush.bf16.msra.mxu0 %v180
    %200 = vmatpush.bf16.msra.mxu0 %v179
    %201 = vmatpush.bf16.msra.mxu0 %v178
    %202 = vmatmul.bf16.gmra.mxu0 %v128
    %v203 = vpop.f32.mrf.mxu0
    %v204 = vadd.f32 0.0, %v203
    %v205 = vpop.f32.mrf.mxu0
    %206 = vdwg.mxu0
    %v207 = vadd.f32 %v129, %v204
    %208 = vst [vmem:[#allocation3] sm:$0xff] %v207
    // Predicated region
    $region38: #{tpu_custom_call.1} parent=1 // pred_check
      %p209 = pneg %p65
    $region39: #{tpu_custom_call.1} parent=1 // pred_check_branch
      %211 = sbr.rel (%p209) target = $region41
    $region40: #{tpu_custom_call.1} parent=1 // pred_region
      %v212 = vld [vmem:[#allocation3] sm:$0xff]
      %213 = vst [vmem:[#allocation11] sm:$0xff] %v212
    $region41: #{tpu_custom_call.1} parent=1 // pred_fallthru
      _
    // Predicated region
    $region42: #{tpu_custom_call.1} parent=1 // pred_check
      _
    $region43: #{tpu_custom_call.1} parent=1 // pred_check_branch
      %215 = sbr.rel (0) target = $region45
    $region44: #{tpu_custom_call.1} parent=1 // pred_region
      %217 = vsyncadd [#allocation6], 0
      %s219 = sshll.u32 [#allocation10], 4
      %s220 = int_to_ptr.vmem [resolvable:$true] %s219
      %s221 = sshll.u32 %s4, 4
      %s222 = int_to_ptr.hbm [resolvable:$true] %s221
      %224 = dma.vmem_to_hbm [thread:$0]  %s220, 128, %s222, [#allocation6]
    $region45: #{tpu_custom_call.1} parent=1 // pred_fallthru
      _
    // Predicated region
    $region46: #{tpu_custom_call.1} parent=1 // pred_check
      _
    $region47: #{tpu_custom_call.1} parent=1 // pred_check_branch
      %226 = sbr.rel (0) target = $region49
    $region48: #{tpu_custom_call.1} parent=1 // pred_region
      %228 = vsyncadd [#allocation12], 0
      %s230 = sshll.u32 [#allocation11], 4
      %s231 = int_to_ptr.vmem [resolvable:$true] %s230
      %s232 = sshll.u32 %s5, 4
      %s233 = int_to_ptr.hbm [resolvable:$true] %s232
      %235 = dma.vmem_to_hbm [thread:$0]  %s231, 128, %s233, [#allocation12]
    $region49: #{tpu_custom_call.1} parent=1 // pred_fallthru
      _
    // Predicated region
    $region50: #{tpu_custom_call.1} parent=1 // pred_check
      _
    $region51: #{tpu_custom_call.1} parent=1 // pred_check_branch
      %237 = sbr.rel (0) target = $region53
    $region52: #{tpu_custom_call.1} parent=1 // pred_region
      %239 = dma.done [#allocation6], 128
    $region53: #{tpu_custom_call.1} parent=1 // pred_fallthru
      _
    // Predicated region
    $region54: #{tpu_custom_call.1} parent=1 // pred_check
      _
    $region55: #{tpu_custom_call.1} parent=1 // pred_check_branch
      %241 = sbr.rel (0) target = $region57
    $region56: #{tpu_custom_call.1} parent=1 // pred_region
      %243 = dma.done [#allocation12], 128
    $region57: #{tpu_custom_call.1} parent=1 // pred_fallthru
      _
    %244 = vsyncpa [#allocation5], 1
    %245 = vsyncpa [#allocation8], 1
    %246 = vsyncpa [#allocation6], 1
    %247 = vsyncpa [#allocation12], 1

</llo_original>
